<compile_context>
chip_gen: v7x
topology: tpu7x:2x2x1
jax: 0.10.0
libtpu: 0.0.40
codegen_flags: <defaults>
</compile_context>

<pallas_src>
import functools

import jax
import jax.numpy as jnp
from jax.experimental import pallas as pl
from jax.experimental.pallas import tpu as pltpu


# ----------------------------------------------------------------------------
# Kernels
# ----------------------------------------------------------------------------
def fcn_kernel_fused(x_ref, w1_ref, b1_ref, w2_ref, b2_ref, o_ref, *,
                     compute_dtype):
    """Both layers in one grid step; W1/W2 fully resident in VMEM."""
    x = x_ref[...].astype(compute_dtype)                     # in-kernel cast
    h = jnp.dot(x, w1_ref[...], preferred_element_type=jnp.float32)
    h = jnp.maximum(h + b1_ref[...], 0.0)                    # bias + ReLU, f32
    y = jnp.dot(h.astype(compute_dtype), w2_ref[...],
                preferred_element_type=jnp.float32)
    o_ref[...] = (y + b2_ref[...]).astype(o_ref.dtype)


def fcn_kernel_ksplit(x_ref, w1_ref, b1_ref, w2_ref, b2_ref, o_ref, acc_ref, *,
                      compute_dtype):
    """Layer-1 contraction split over a K grid axis (last, 'arbitrary')."""
    k = pl.program_id(1)

    @pl.when(k == 0)
    def _():
        acc_ref[...] = jnp.zeros_like(acc_ref)

    x = x_ref[...].astype(compute_dtype)
    acc_ref[...] += jnp.dot(x, w1_ref[...],
                            preferred_element_type=jnp.float32)

    @pl.when(k == pl.num_programs(1) - 1)
    def _():
        h = jnp.maximum(acc_ref[...] + b1_ref[...], 0.0)
        y = jnp.dot(h.astype(compute_dtype), w2_ref[...],
                    preferred_element_type=jnp.float32)
        o_ref[...] = (y + b2_ref[...]).astype(o_ref.dtype)


# ----------------------------------------------------------------------------
# Device / configuration helpers
# ----------------------------------------------------------------------------
def _round_up(x, m):
    return ((x + m - 1) // m) * m


def _device_kind():
    try:
        return jax.devices()[0].device_kind.lower()
    except Exception:  # noqa: BLE001
        return ""


def _vmem_capacity_bytes(kind):
    try:
        cap = getattr(pltpu.get_tpu_info(), "vmem_capacity_bytes", None)
        if cap:
            return int(cap)
    except Exception:  # noqa: BLE001
        pass
    if not kind or "v7" in kind:
        return 64 << 20          # conservative: v7x has 64 MiB per TensorCore
    return 128 << 20             # v5e / v6e


def _pick_row_tile(B, kind):
    if "v5" in kind:
        base = 256 if B >= 512 else 128
    elif "v7" in kind:
        base = 256
        # Make sure both TensorCores get at least one grid step.
        if B > 128 and -(-B // base) < 2:
            base = 128
    else:  # v6e and unknown
        base = 512 if B >= 1024 else 256
    return max(8, min(base, _round_up(B, 8)))


_BUFFERED_OK = None


def _buffered_supported():
    """Probe pipeline_mode=pl.Buffered(1) once with a tiny kernel compile."""
    global _BUFFERED_OK
    if _BUFFERED_OK is not None:
        return _BUFFERED_OK
    if not hasattr(pl, "Buffered"):
        _BUFFERED_OK = False
        return _BUFFERED_OK
    try:
        def _probe(a_ref, o_ref):
            o_ref[...] = a_ref[...] + 1.0

        fn = pl.pallas_call(
            _probe,
            out_shape=jax.ShapeDtypeStruct((8, 128), jnp.float32),
            grid_spec=pltpu.PrefetchScalarGridSpec(
                num_scalar_prefetch=0,
                grid=(1,),
                in_specs=[pl.BlockSpec((8, 128), lambda i: (0, 0),
                                       pipeline_mode=pl.Buffered(1))],
                out_specs=pl.BlockSpec((8, 128), lambda i: (0, 0)),
            ),
        )
        jax.block_until_ready(fn(jnp.zeros((8, 128), jnp.float32)))
        _BUFFERED_OK = True
    except Exception:  # noqa: BLE001 - probe only; real kernel never retried
        _BUFFERED_OK = False
    return _BUFFERED_OK


# ----------------------------------------------------------------------------
# Public API
# ----------------------------------------------------------------------------
def prepare_fcn_params(w1, b1, w2, b2, compute_dtype=jnp.bfloat16):
    """Pre-cast parameters once (amortizes the f32->bf16 pass across calls)."""
    H = w1.shape[1]
    D_out = w2.shape[1]
    return dict(
        w1=jnp.asarray(w1, compute_dtype),
        b1=jnp.asarray(b1, jnp.float32).reshape(1, H),
        w2=jnp.asarray(w2, compute_dtype),
        b2=jnp.asarray(b2, jnp.float32).reshape(1, D_out),
    )


def fcn_forward(x, params, *, tm=None, out_dtype=None):
    """y = relu(x @ w1 + b1) @ w2 + b2, fused in a single Pallas kernel."""
    w1, b1, w2, b2 = params["w1"], params["b1"], params["w2"], params["b2"]
    B, D_in = x.shape
    H = w1.shape[1]
    D_out = w2.shape[1]
    assert w1.shape[0] == D_in and w2.shape[0] == H

    out_dtype = x.dtype if out_dtype is None else out_dtype
    compute_dtype = w1.dtype
    w_bytes = jnp.dtype(compute_dtype).itemsize
    x_bytes = jnp.dtype(x.dtype).itemsize
    o_bytes = jnp.dtype(out_dtype).itemsize

    kind = _device_kind()
    vmem_cap = _vmem_capacity_bytes(kind)

    if tm is None:
        tm = _pick_row_tile(B, kind)
    tm = max(8, min(_round_up(tm, 8), _round_up(B, 8)))
    num_row = pl.cdiv(B, tm)

    # Layer-1 K split when resident W1 would blow the per-device VMEM budget.
    w1_budget = min(vmem_cap // 3, 32 << 20)
    tk = D_in
    while (tk * H * w_bytes > w1_budget and tk % 2 == 0
           and (tk // 2) % 128 == 0 and tk // 2 >= 512):
        tk //= 2
    num_k = D_in // tk  # tk always divides D_in by construction

    use_buffered = _buffered_supported()
    const_kw = dict(pipeline_mode=pl.Buffered(1)) if use_buffered else {}

    if num_k == 1:
        kernel = functools.partial(fcn_kernel_fused, compute_dtype=compute_dtype)
        grid = (num_row,)
        in_specs = [
            pl.BlockSpec((tm, D_in), lambda i: (i, 0)),                 # x tile
            pl.BlockSpec((D_in, H), lambda i: (0, 0), **const_kw),      # W1
            pl.BlockSpec((1, H), lambda i: (0, 0), **const_kw),         # b1
            pl.BlockSpec((H, D_out), lambda i: (0, 0), **const_kw),     # W2
            pl.BlockSpec((1, D_out), lambda i: (0, 0), **const_kw),     # b2
        ]
        out_specs = pl.BlockSpec((tm, D_out), lambda i: (i, 0))
        scratch_shapes = []
        dims = ("parallel",)
    else:
        kernel = functools.partial(fcn_kernel_ksplit, compute_dtype=compute_dtype)
        grid = (num_row, num_k)
        in_specs = [
            pl.BlockSpec((tm, tk), lambda i, k: (i, k)),                # x chunk
            pl.BlockSpec((tk, H), lambda i, k: (k, 0)),                 # W1 chunk (streamed)
            pl.BlockSpec((1, H), lambda i, k: (0, 0), **const_kw),      # b1
            pl.BlockSpec((H, D_out), lambda i, k: (0, 0), **const_kw),  # W2
            pl.BlockSpec((1, D_out), lambda i, k: (0, 0), **const_kw),  # b2
        ]
        out_specs = pl.BlockSpec((tm, D_out), lambda i, k: (i, 0))
        scratch_shapes = [pltpu.VMEM((tm, H), jnp.float32)]
        dims = ("parallel", "arbitrary")

    # VMEM requirement estimate -> per-generation limit with headroom.
    nbuf_const = 1 if use_buffered else 2
    need = (
        2 * tm * tk * x_bytes                                   # x tile (dbl buf)
        + (nbuf_const if num_k == 1 else 2) * tk * H * w_bytes  # W1
        + nbuf_const * (H * 4 + H * D_out * w_bytes + D_out * 4)
        + 2 * tm * D_out * o_bytes                              # out tile (dbl buf)
        + tm * H * 4 * (2 if num_k > 1 else 1)                  # h temp (+acc)
    )
    vmem_limit = int(min(vmem_cap * 3 // 4, max(32 << 20, need + need // 2)))

    flops = 2 * B * (D_in * H + H * D_out)
    bytes_accessed = (B * D_in * x_bytes + D_in * H * w_bytes
                      + H * D_out * w_bytes + (H + D_out) * 4
                      + B * D_out * o_bytes)

    call = pl.pallas_call(
        kernel,
        out_shape=jax.ShapeDtypeStruct((B, D_out), out_dtype),
        grid_spec=pltpu.PrefetchScalarGridSpec(
            num_scalar_prefetch=0,
            grid=grid,
            in_specs=in_specs,
            out_specs=out_specs,
            scratch_shapes=scratch_shapes,
        ),
        compiler_params=pltpu.CompilerParams(
            dimension_semantics=dims,
            vmem_limit_bytes=vmem_limit,
        ),
        cost_estimate=pl.CostEstimate(
            flops=flops, transcendentals=0, bytes_accessed=bytes_accessed),
    )
    return call(x, w1, b1, w2, b2)


# ----------------------------------------------------------------------------
# Reference + synthetic params
# ----------------------------------------------------------------------------
def make_params(key, indim, out_dim):
    """Synthetic params matching FCN(indim, out_dim, num_layers=2).

    PyTorch nn.Linear stores weight as (out, in); we store (in, out) so the
    kernel computes x @ W + b (equivalent to x @ weight.T + bias).
    """
    k1, k2, k3, k4 = jax.random.split(key, 4)
    h, d_out = out_dim
    lim1 = 1.0 / jnp.sqrt(indim)
    lim2 = 1.0 / jnp.sqrt(h)
    w1 = jax.random.uniform(k1, (indim, h), jnp.float32, -lim1, lim1)
    b1 = jax.random.uniform(k2, (h,), jnp.float32, -lim1, lim1)
    w2 = jax.random.uniform(k3, (h, d_out), jnp.float32, -lim2, lim2)
    b2 = jax.random.uniform(k4, (d_out,), jnp.float32, -lim2, lim2)
    return w1, b1, w2, b2


def fcn_reference(x, w1, b1, w2, b2):
    h = jnp.maximum(x @ w1 + b1, 0.0)
    return h @ w2 + b2


if __name__ == "__main__":
    # Small shapes consistent with FCN's forward: x is (batch, indim),
    # out_dim = [hidden, out].  Real defaults are 2048 / [512, 2048].
    batch, indim = 48, 256
    out_dim = [128, 256]

    key = jax.random.PRNGKey(0)
    kx, kp = jax.random.split(key)
    x = jax.random.normal(kx, (batch, indim), jnp.float32)
    w1, b1, w2, b2 = make_params(kp, indim, out_dim)

    # Pre-cast weights once (bf16 MXU operands, f32 biases), reused per call.
    params = prepare_fcn_params(w1, b1, w2, b2, compute_dtype=jnp.bfloat16)

    y_ref = fcn_reference(x, w1, b1, w2, b2)

    # 1) Auto-picked row tile (single full block, no padding / no masking).
    y = jax.block_until_ready(fcn_forward(x, params))
    assert y.shape == (batch, out_dim[-1])
    assert jnp.allclose(y, y_ref, atol=3e-2, rtol=3e-2), "mismatch (auto tm)"

    # 2) Small forced tile so the grid has multiple steps and a ragged last
    #    block (48 = 32 + 16), exercising Pallas' masked-write path.
    y2 = jax.block_until_ready(fcn_forward(x, params, tm=32))
    assert y2.shape == (batch, out_dim[-1])
    assert jnp.allclose(y2, y_ref, atol=3e-2, rtol=3e-2), "mismatch (tm=32)"

    # TODO(synk): optional fp8 (v7x) / int8 (v6e) weight paths with
    # per-channel scales applied after the f32 accumulate.
    print("KERNEL_OK")
</pallas_src>

<mosaic_0001>
module attributes {stable_mosaic.version = 11 : i64} {
  func.func @_probe(%arg0: i32, %arg1: memref<8x128xf32, #tpu.memory_space<vmem>>, %arg2: memref<8x128xf32, #tpu.memory_space<vmem>>) attributes {dimension_semantics = [#tpu.dimension_semantics<arbitrary>], iteration_bounds = array<i64: 1>, scalar_prefetch = 0 : i64, scratch_operands = 0 : i64, tpu.core_type = #tpu.core_type<tc>, window_params = [{pipeline_mode = #tpu.pipeline_mode<synchronous>, transform_indices = @transform_0, window_bounds = array<i64: 8, 128>}, {pipeline_mode = #tpu.pipeline_mode<synchronous>, transform_indices = @transform_1, window_bounds = array<i64: 8, 128>}]} {
    %c0 = arith.constant 0 : index
    %c0_0 = arith.constant 0 : index
    %0 = vector.load %arg1[%c0, %c0_0] : memref<8x128xf32, #tpu.memory_space<vmem>>, vector<8x128xf32>
    %cst = arith.constant 1.000000e+00 : f32
    %1 = vector.broadcast %cst : f32 to vector<8x128xf32>
    %2 = arith.addf %0, %1 : vector<8x128xf32>
    %c0_1 = arith.constant 0 : index
    %c0_2 = arith.constant 0 : index
    %3 = vector.load %arg2[%c0_1, %c0_2] : memref<8x128xf32, #tpu.memory_space<vmem>>, vector<8x128xf32>
    tpu.vector_store %arg2[%c0_1, %c0_2], %2 {strides = array<i32>} : memref<8x128xf32, #tpu.memory_space<vmem>>, vector<8x128xf32>,
    return
  }
  func.func @transform_0(%arg0: i32) -> (i32, i32) {
    %c0_i32 = arith.constant 0 : i32
    %c0_i32_0 = arith.constant 0 : i32
    %c0_i32_1 = arith.constant 0 : i32
    return %c0_i32, %c0_i32_0 : i32, i32
  }
  func.func @transform_1(%arg0: i32) -> (i32, i32) {
    %c0_i32 = arith.constant 0 : i32
    %c0_i32_0 = arith.constant 0 : i32
    %c0_i32_1 = arith.constant 0 : i32
    return %c0_i32, %c0_i32_0 : i32, i32
  }
}

module attributes {stable_mosaic.version = 11 : i64} {
  func.func @fcn_kernel_fused(%arg0: i32, %arg1: memref<48x256xf32, #tpu.memory_space<vmem>>, %arg2: memref<256x128xbf16, #tpu.memory_space<vmem>>, %arg3: memref<1x128xf32, #tpu.memory_space<vmem>>, %arg4: memref<128x256xbf16, #tpu.memory_space<vmem>>, %arg5: memref<1x256xf32, #tpu.memory_space<vmem>>, %arg6: memref<48x256xf32, #tpu.memory_space<vmem>>) attributes {dimension_semantics = [#tpu.dimension_semantics<parallel>], iteration_bounds = array<i64: 1>, scalar_prefetch = 0 : i64, scratch_operands = 0 : i64, tpu.core_type = #tpu.core_type<tc>, window_params = [{transform_indices = @transform_0, window_bounds = array<i64: 48, 256>}, {pipeline_mode = #tpu.pipeline_mode<synchronous>, transform_indices = @transform_1, window_bounds = array<i64: 256, 128>}, {pipeline_mode = #tpu.pipeline_mode<synchronous>, transform_indices = @transform_2, window_bounds = array<i64: 1, 128>}, {pipeline_mode = #tpu.pipeline_mode<synchronous>, transform_indices = @transform_3, window_bounds = array<i64: 128, 256>}, {pipeline_mode = #tpu.pipeline_mode<synchronous>, transform_indices = @transform_4, window_bounds = array<i64: 1, 256>}, {transform_indices = @transform_5, window_bounds = array<i64: 48, 256>}]} {
    %c0 = arith.constant 0 : index
    %c0_0 = arith.constant 0 : index
    %0 = vector.load %arg1[%c0, %c0_0] : memref<48x256xf32, #tpu.memory_space<vmem>>, vector<48x256xf32>
    %1 = arith.truncf %0 : vector<48x256xf32> to vector<48x256xbf16>
    %c0_1 = arith.constant 0 : index
    %c0_2 = arith.constant 0 : index
    %2 = vector.load %arg2[%c0_1, %c0_2] : memref<256x128xbf16, #tpu.memory_space<vmem>>, vector<256x128xbf16>
    %cst = arith.constant dense<0.000000e+00> : vector<48x128xf32>
    %3 = tpu.matmul %1, %2, %cst {dimension_numbers = #tpu.dot_dimension_numbers<[1], [0], [0], [1], [0, 0, 1, 1], [], []>} : vector<48x256xbf16>, vector<256x128xbf16>, vector<48x128xf32> -> vector<48x128xf32>
    %c0_3 = arith.constant 0 : index
    %c0_4 = arith.constant 0 : index
    %4 = vector.load %arg3[%c0_3, %c0_4] : memref<1x128xf32, #tpu.memory_space<vmem>>, vector<1x128xf32>
    %5 = vector.broadcast %4 : vector<1x128xf32> to vector<48x128xf32>
    %6 = arith.addf %3, %5 : vector<48x128xf32>
    %cst_5 = arith.constant 0.000000e+00 : f32
    %7 = vector.broadcast %cst_5 : f32 to vector<48x128xf32>
    %8 = arith.maximumf %6, %7 : vector<48x128xf32>
    %9 = arith.truncf %8 : vector<48x128xf32> to vector<48x128xbf16>
    %c0_6 = arith.constant 0 : index
    %c0_7 = arith.constant 0 : index
    %10 = vector.load %arg4[%c0_6, %c0_7] : memref<128x256xbf16, #tpu.memory_space<vmem>>, vector<128x256xbf16>
    %cst_8 = arith.constant dense<0.000000e+00> : vector<48x256xf32>
    %11 = tpu.matmul %9, %10, %cst_8 {dimension_numbers = #tpu.dot_dimension_numbers<[1], [0], [0], [1], [0, 0, 1, 1], [], []>} : vector<48x128xbf16>, vector<128x256xbf16>, vector<48x256xf32> -> vector<48x256xf32>
    %c0_9 = arith.constant 0 : index
    %c0_10 = arith.constant 0 : index
    %12 = vector.load %arg5[%c0_9, %c0_10] : memref<1x256xf32, #tpu.memory_space<vmem>>, vector<1x256xf32>
    %13 = vector.broadcast %12 : vector<1x256xf32> to vector<48x256xf32>
    %14 = arith.addf %11, %13 : vector<48x256xf32>
    %c0_11 = arith.constant 0 : index
    %c0_12 = arith.constant 0 : index
    %15 = vector.load %arg6[%c0_11, %c0_12] : memref<48x256xf32, #tpu.memory_space<vmem>>, vector<48x256xf32>
    tpu.vector_store %arg6[%c0_11, %c0_12], %14 {strides = array<i32>} : memref<48x256xf32, #tpu.memory_space<vmem>>, vector<48x256xf32>,
    return
  }
  func.func @transform_0(%arg0: i32) -> (i32, i32) {
    %c0_i32 = arith.constant 0 : i32
    %c0_i32_0 = arith.constant 0 : i32
    return %arg0, %c0_i32 : i32, i32
  }
  func.func @transform_1(%arg0: i32) -> (i32, i32) {
    %c0_i32 = arith.constant 0 : i32
    %c0_i32_0 = arith.constant 0 : i32
    %c0_i32_1 = arith.constant 0 : i32
    return %c0_i32, %c0_i32_0 : i32, i32
  }
  func.func @transform_2(%arg0: i32) -> (i32, i32) {
    %c0_i32 = arith.constant 0 : i32
    %c0_i32_0 = arith.constant 0 : i32
    %c0_i32_1 = arith.constant 0 : i32
    return %c0_i32, %c0_i32_0 : i32, i32
  }
  func.func @transform_3(%arg0: i32) -> (i32, i32) {
    %c0_i32 = arith.constant 0 : i32
    %c0_i32_0 = arith.constant 0 : i32
    %c0_i32_1 = arith.constant 0 : i32
    return %c0_i32, %c0_i32_0 : i32, i32
  }
  func.func @transform_4(%arg0: i32) -> (i32, i32) {
    %c0_i32 = arith.constant 0 : i32
    %c0_i32_0 = arith.constant 0 : i32
    %c0_i32_1 = arith.constant 0 : i32
    return %c0_i32, %c0_i32_0 : i32, i32
  }
  func.func @transform_5(%arg0: i32) -> (i32, i32) {
    %c0_i32 = arith.constant 0 : i32
    %c0_i32_0 = arith.constant 0 : i32
    return %arg0, %c0_i32 : i32, i32
  }
}

</mosaic_0001>

<llo_original>
// kernel: tpu_custom_call.1
$region0: #{tpu_custom_call.1}
  #allocation0 [shape = 'u32[]', space=smem, size = 0x4, offset = 0x4, fixed_abs, tag = 'smem constant byte address 0x4 - core index']
  #allocation1 [shape = 'u32[144,128]{1,0:T(1,128)}', space=vmem, size = 0x12000, scoped, tag = 'internal scratch']
  %s0 = inlined_call_operand.hbm [shape: f32[8,128], index: 0, kind: input, shape index: {}]
  %s1 = inlined_call_operand.hbm [shape: f32[8,128], index: 1, kind: output, shape index: {}]
  %s2 = sld [smem:[#allocation0]]
  $region18: #{tpu_custom_call.1} parent=0
    _
  %s4 = ssub.s32 1, %s2
  %s5 = scalar_select 0, %s4, %s2
  $region1: #{tpu_custom_call.1} parent=0
    #allocation2 [shape = 'u8[4096]{0}', space=vmem, size = 0x1000, scoped, tag = 'input window, operand 0, single buffered']
    #allocation3 [shape = 's32[1]{0}', space=sflag, size = 0x4, scoped, tag = 'scoped memory for tpu_custom_call.1']
    #allocation4 [shape = 's32[1]{0}', space=sflag, size = 0x4, scoped, tag = 'scoped memory for tpu_custom_call.1']
    #allocation5 [shape = 'u8[4096]{0}', space=vmem, size = 0x1000, scoped, tag = 'output window, operand 0, single buffered']
    %6 = vsyncpa [#allocation3], 0
    %7 = vsyncpa [#allocation4], 0
    // Predicated region
    $region2: #{tpu_custom_call.1} parent=1 // pred_check
      _
    $region3: #{tpu_custom_call.1} parent=1 // pred_check_branch
      %9 = sbr.rel (0) target = $region5
    $region4: #{tpu_custom_call.1} parent=1 // pred_region
      %s11 = ssub.s32 128, 128
      %12 = vsyncadd [#allocation3], %s11
      %s14 = sshll.u32 [#allocation2], 4
      %s15 = int_to_ptr.vmem [resolvable:$true] %s14
      %17 = dma.hbm_to_vmem [thread:$0]  %s0, 128, %s15, [#allocation3]
    $region5: #{tpu_custom_call.1} parent=1 // pred_fallthru
      _
    // Predicated region
    $region6: #{tpu_custom_call.1} parent=1 // pred_check
      _
    $region7: #{tpu_custom_call.1} parent=1 // pred_check_branch
      %19 = sbr.rel (0) target = $region9
    $region8: #{tpu_custom_call.1} parent=1 // pred_region
      %20 = dma.done [#allocation3], 128
    $region9: #{tpu_custom_call.1} parent=1 // pred_fallthru
      _
    %v21 = vld [vmem:[#allocation2] sm:$0xff]
    %v22 = vadd.f32 %v21, 1.0
    %23 = vst [vmem:[#allocation5] sm:$0xff] %v22
    // Predicated region
    $region10: #{tpu_custom_call.1} parent=1 // pred_check
      _
    $region11: #{tpu_custom_call.1} parent=1 // pred_check_branch
      %25 = sbr.rel (0) target = $region13
    $region12: #{tpu_custom_call.1} parent=1 // pred_region
      %s27 = ssub.s32 128, 128
      %28 = vsyncadd [#allocation4], %s27
      %s30 = sshll.u32 [#allocation5], 4
      %s31 = int_to_ptr.vmem [resolvable:$true] %s30
      %33 = dma.vmem_to_hbm [thread:$0]  %s31, 128, %s1, [#allocation4]
    $region13: #{tpu_custom_call.1} parent=1 // pred_fallthru
      _
    // Predicated region
    $region14: #{tpu_custom_call.1} parent=1 // pred_check
      _
    $region15: #{tpu_custom_call.1} parent=1 // pred_check_branch
      %35 = sbr.rel (0) target = $region17
    $region16: #{tpu_custom_call.1} parent=1 // pred_region
      %36 = dma.done [#allocation4], 128
    $region17: #{tpu_custom_call.1} parent=1 // pred_fallthru
      _
    %37 = vsyncpa [#allocation3], 1
    %38 = vsyncpa [#allocation4], 1

// kernel: tpu_custom_call.1
$region0: #{tpu_custom_call.1}
  #allocation0 [shape = 'u32[]', space=smem, size = 0x4, offset = 0x4, fixed_abs, tag = 'smem constant byte address 0x4 - core index']
  #allocation1 [shape = 'u32[144,128]{1,0:T(1,128)}', space=vmem, size = 0x12000, scoped, tag = 'internal scratch']
  %s0 = inlined_call_operand.hbm [shape: f32[48,256], index: 0, kind: input, shape index: {}]
  %s1 = inlined_call_operand.hbm [shape: bf16[256,128], index: 1, kind: input, shape index: {}]
  %s2 = inlined_call_operand.vmem [shape: f32[1,128], index: 2, kind: input, shape index: {}]
  %s3 = inlined_call_operand.hbm [shape: bf16[128,256], index: 3, kind: input, shape index: {}]
  %s4 = inlined_call_operand.vmem [shape: f32[1,256], index: 4, kind: input, shape index: {}]
  %s5 = inlined_call_operand.hbm [shape: f32[48,256], index: 5, kind: output, shape index: {}]
  %s6 = sld [smem:[#allocation0]]
  $region42: #{tpu_custom_call.1} parent=0
    _
  %s8 = ssub.s32 1, %s6
  %s9 = scalar_select 0, %s8, %s6
  $region1: #{tpu_custom_call.1} parent=0
    #allocation2 [shape = 'u8[49152]{0}', space=vmem, size = 0xc000, scoped, tag = 'input window, operand 0, single buffered']
    #allocation3 [shape = 's32[1]{0}', space=sflag, size = 0x4, scoped, tag = 'scoped memory for tpu_custom_call.1']
    #allocation4 [shape = 's32[1]{0}', space=sflag, size = 0x4, scoped, tag = 'scoped memory for tpu_custom_call.1']
    #allocation5 [shape = 'u8[65536]{0}', space=vmem, size = 0x10000, scoped, tag = 'input window, operand 1, single buffered']
    #allocation6 [shape = 's32[1]{0}', space=sflag, size = 0x4, scoped, tag = 'scoped memory for tpu_custom_call.1']
    #allocation7 [shape = 'u8[65536]{0}', space=vmem, size = 0x10000, scoped, tag = 'input window, operand 3, single buffered']
    #allocation8 [shape = 'u8[49152]{0}', space=vmem, size = 0xc000, scoped, tag = 'output window, operand 0, single buffered']
    %10 = vsyncpa [#allocation3], 0
    %11 = vsyncpa [#allocation6], 0
    %12 = vsyncpa [#allocation4], 0
    // Predicated region
    $region2: #{tpu_custom_call.1} parent=1 // pred_check
      _
    $region3: #{tpu_custom_call.1} parent=1 // pred_check_branch
      %14 = sbr.rel (0) target = $region5
    $region4: #{tpu_custom_call.1} parent=1 // pred_region
      %s16 = ssub.s32 1536, 1536
      %17 = vsyncadd [#allocation3], %s16
      %s18 = sshll.u32 [#allocation2], 4
      %s19 = int_to_ptr.vmem [resolvable:$true] %s18
      %24 = dma.hbm_to_vmem [thread:$0]  %s0, 1536, %s19, [#allocation3], 256, 256, 16
    $region5: #{tpu_custom_call.1} parent=1 // pred_fallthru
      _
    // Predicated region
    $region6: #{tpu_custom_call.1} parent=1 // pred_check
      _
    $region7: #{tpu_custom_call.1} parent=1 // pred_check_branch
      %26 = sbr.rel (0) target = $region9
    $region8: #{tpu_custom_call.1} parent=1 // pred_region
      %s28 = ssub.s32 2048, 2048
      %29 = vsyncadd [#allocation6], %s28
      %s30 = sshll.u32 [#allocation5], 4
      %s31 = int_to_ptr.vmem [resolvable:$true] %s30
      %36 = dma.hbm_to_vmem [thread:$0]  %s1, 2048, %s31, [#allocation6], 64, 64, 4
    $region9: #{tpu_custom_call.1} parent=1 // pred_fallthru
      _
    // Predicated region
    $region10: #{tpu_custom_call.1} parent=1 // pred_check
      _
    $region11: #{tpu_custom_call.1} parent=1 // pred_check_branch
      %38 = sbr.rel (0) target = $region13
    $region12: #{tpu_custom_call.1} parent=1 // pred_region
      _
    $region13: #{tpu_custom_call.1} parent=1 // pred_fallthru
      _
    // Predicated region
    $region14: #{tpu_custom_call.1} parent=1 // pred_check
      _
    $region15: #{tpu_custom_call.1} parent=1 // pred_check_branch
      %40 = sbr.rel (0) target = $region17
    $region16: #{tpu_custom_call.1} parent=1 // pred_region
      %s42 = ssub.s32 2048, 2048
      %43 = vsyncadd [#allocation6], %s42
      %s44 = sshll.u32 [#allocation7], 4
      %s45 = int_to_ptr.vmem [resolvable:$true] %s44
      %50 = dma.hbm_to_vmem [thread:$0]  %s3, 2048, %s45, [#allocation6], 128, 128, 8
    $region17: #{tpu_custom_call.1} parent=1 // pred_fallthru
      _
    // Predicated region
    $region18: #{tpu_custom_call.1} parent=1 // pred_check
      _
    $region19: #{tpu_custom_call.1} parent=1 // pred_check_branch
      %52 = sbr.rel (0) target = $region21
    $region20: #{tpu_custom_call.1} parent=1 // pred_region
      _
    $region21: #{tpu_custom_call.1} parent=1 // pred_fallthru
      _
    // Predicated region
    $region22: #{tpu_custom_call.1} parent=1 // pred_check
      _
    $region23: #{tpu_custom_call.1} parent=1 // pred_check_branch
      %54 = sbr.rel (0) target = $region25
    $region24: #{tpu_custom_call.1} parent=1 // pred_region
      %55 = dma.done [#allocation3], 1536
    $region25: #{tpu_custom_call.1} parent=1 // pred_fallthru
      _
    // Predicated region
    $region26: #{tpu_custom_call.1} parent=1 // pred_check
      _
    $region27: #{tpu_custom_call.1} parent=1 // pred_check_branch
      %57 = sbr.rel (0) target = $region29
    $region28: #{tpu_custom_call.1} parent=1 // pred_region
      %58 = dma.done [#allocation6], 2048
    $region29: #{tpu_custom_call.1} parent=1 // pred_fallthru
      _
    // Predicated region
    $region30: #{tpu_custom_call.1} parent=1 // pred_check
      _
    $region31: #{tpu_custom_call.1} parent=1 // pred_check_branch
      %60 = sbr.rel (0) target = $region33
    $region32: #{tpu_custom_call.1} parent=1 // pred_region
      %61 = dma.done [#allocation6], 2048
    $region33: #{tpu_custom_call.1} parent=1 // pred_fallthru
      _
    %v63 = vld [vmem:[#allocation2] sm:$0xff]
    %v64 = vld [vmem:[#allocation2 + $0x8] sm:$0xff]
    %v65 = vld [vmem:[#allocation2 + $0x10] sm:$0xff]
    %v66 = vld [vmem:[#allocation2 + $0x18] sm:$0xff]
    %v67 = vld [vmem:[#allocation2 + $0x20] sm:$0xff]
    %v68 = vld [vmem:[#allocation2 + $0x28] sm:$0xff]
    %v69 = vld [vmem:[#allocation2 + $0x30] sm:$0xff]
    %v70 = vld [vmem:[#allocation2 + $0x38] sm:$0xff]
    %v71 = vld [vmem:[#allocation2 + $0x40] sm:$0xff]
    %v72 = vld [vmem:[#allocation2 + $0x48] sm:$0xff]
    %v73 = vld [vmem:[#allocation2 + $0x50] sm:$0xff]
    %v74 = vld [vmem:[#allocation2 + $0x58] sm:$0xff]
    %v75 = vpack.c.bf16 %v65, %v63
    %v76 = vpack.c.bf16 %v66, %v64
    %v77 = vpack.c.bf16 %v69, %v67
    %v78 = vpack.c.bf16 %v70, %v68
    %v79 = vpack.c.bf16 %v73, %v71
    %v80 = vpack.c.bf16 %v74, %v72
    %v81 = vld [vmem:[#allocation5] sm:$0xf]
    %v82 = vld [vmem:[#allocation5 + $0x4] sm:$0xf]
    %v83 = vld [vmem:[#allocation5 + $0x8] sm:$0xf]
    %v84 = vld [vmem:[#allocation5 + $0xc] sm:$0xf]
    %v85 = vld [vmem:[#allocation5 + $0x10] sm:$0xf]
    %v86 = vld [vmem:[#allocation5 + $0x14] sm:$0xf]
    %v87 = vld [vmem:[#allocation5 + $0x18] sm:$0xf]
    %v88 = vld [vmem:[#allocation5 + $0x1c] sm:$0xf]
    %v89 = vld [vmem:[#allocation5 + $0x20] sm:$0xf]
    %v90 = vld [vmem:[#allocation5 + $0x24] sm:$0xf]
    %v91 = vld [vmem:[#allocation5 + $0x28] sm:$0xf]
    %v92 = vld [vmem:[#allocation5 + $0x2c] sm:$0xf]
    %v93 = vld [vmem:[#allocation5 + $0x30] sm:$0xf]
    %v94 = vld [vmem:[#allocation5 + $0x34] sm:$0xf]
    %v95 = vld [vmem:[#allocation5 + $0x38] sm:$0xf]
    %v96 = vld [vmem:[#allocation5 + $0x3c] sm:$0xf]
    %v97 = vld [vmem:[#allocation5 + $0x40] sm:$0xf]
    %v98 = vld [vmem:[#allocation5 + $0x44] sm:$0xf]
    %v99 = vld [vmem:[#allocation5 + $0x48] sm:$0xf]
    %v100 = vld [vmem:[#allocation5 + $0x4c] sm:$0xf]
    %v101 = vld [vmem:[#allocation5 + $0x50] sm:$0xf]
    %v102 = vld [vmem:[#allocation5 + $0x54] sm:$0xf]
    %v103 = vld [vmem:[#allocation5 + $0x58] sm:$0xf]
    %v104 = vld [vmem:[#allocation5 + $0x5c] sm:$0xf]
    %v105 = vld [vmem:[#allocation5 + $0x60] sm:$0xf]
    %v106 = vld [vmem:[#allocation5 + $0x64] sm:$0xf]
    %v107 = vld [vmem:[#allocation5 + $0x68] sm:$0xf]
    %v108 = vld [vmem:[#allocation5 + $0x6c] sm:$0xf]
    %v109 = vld [vmem:[#allocation5 + $0x70] sm:$0xf]
    %v110 = vld [vmem:[#allocation5 + $0x74] sm:$0xf]
    %v111 = vld [vmem:[#allocation5 + $0x78] sm:$0xf]
    %v112 = vld [vmem:[#allocation5 + $0x7c] sm:$0xf]
    %v113 = vld [vmem:[%s2] sm:$0x1]
    %v115 = vlaneseq
    %v116 = vshrl.u32 %v115, 7
    %v117 = vsub.s32 0, %v116
    %v118 = vrot.slane %v113, %v117
    %v152 = vunpack.c.l.b16 %v81
    %v153 = vunpack.c.l.b16 %v82
    %v154 = vunpack.c.l.b16 %v83
    %v155 = vunpack.c.l.b16 %v84
    %v156 = vunpack.c.l.b16 %v85
    %v157 = vunpack.c.l.b16 %v86
    %v158 = vunpack.c.l.b16 %v87
    %v159 = vunpack.c.l.b16 %v88
    %v160 = vunpack.c.l.b16 %v89
    %v161 = vunpack.c.l.b16 %v90
    %v162 = vunpack.c.l.b16 %v91
    %v163 = vunpack.c.l.b16 %v92
    %v164 = vunpack.c.l.b16 %v93
    %v165 = vunpack.c.l.b16 %v94
    %v166 = vunpack.c.l.b16 %v95
    %v167 = vunpack.c.l.b16 %v96
    %v168 = vunpack.c.l.b16 %v97
    %v169 = vunpack.c.l.b16 %v98
    %v170 = vunpack.c.l.b16 %v99
    %v171 = vunpack.c.l.b16 %v100
    %v172 = vunpack.c.l.b16 %v101
    %v173 = vunpack.c.l.b16 %v102
    %v174 = vunpack.c.l.b16 %v103
    %v175 = vunpack.c.l.b16 %v104
    %v176 = vunpack.c.l.b16 %v105
    %v177 = vunpack.c.l.b16 %v106
    %v178 = vunpack.c.l.b16 %v107
    %v179 = vunpack.c.l.b16 %v108
    %v180 = vunpack.c.l.b16 %v109
    %v181 = vunpack.c.l.b16 %v110
    %v182 = vunpack.c.l.b16 %v111
    %v183 = vunpack.c.l.b16 %v112
    %v184 = vpack.c.b16 %v153, %v152
    %v185 = vpack.c.b16 %v155, %v154
    %v186 = vpack.c.b16 %v157, %v156
    %v187 = vpack.c.b16 %v159, %v158
    %v188 = vpack.c.b16 %v161, %v160
    %v189 = vpack.c.b16 %v163, %v162
    %v190 = vpack.c.b16 %v165, %v164
    %v191 = vpack.c.b16 %v167, %v166
    %v192 = vpack.c.b16 %v169, %v168
    %v193 = vpack.c.b16 %v171, %v170
    %v194 = vpack.c.b16 %v173, %v172
    %v195 = vpack.c.b16 %v175, %v174
    %v196 = vpack.c.b16 %v177, %v176
    %v197 = vpack.c.b16 %v179, %v178
    %v198 = vpack.c.b16 %v181, %v180
    %v199 = vpack.c.b16 %v183, %v182
    %216 = vmatprep.subr.bf16.mxu0 0
    %217 = vmatpush1.bf16.msra.mxu0 %v184
    %218 = vmatprep.subr.bf16.mxu0 0
    %219 = vmatpush1.bf16.msra.mxu0 %v185
    %220 = vmatprep.subr.bf16.mxu0 0
    %221 = vmatpush1.bf16.msra.mxu0 %v186
    %222 = vmatprep.subr.bf16.mxu0 0
    %223 = vmatpush1.bf16.msra.mxu0 %v187
    %224 = vmatprep.subr.bf16.mxu0 0
    %225 = vmatpush1.bf16.msra.mxu0 %v188
    %226 = vmatprep.subr.bf16.mxu0 0
    %227 = vmatpush1.bf16.msra.mxu0 %v189
    %228 = vmatprep.subr.bf16.mxu0 0
    %229 = vmatpush1.bf16.msra.mxu0 %v190
    %230 = vmatprep.subr.bf16.mxu0 0
    %231 = vmatpush1.bf16.msra.mxu0 %v191
    %232 = vmatprep.subr.bf16.mxu0 0
    %233 = vmatpush1.bf16.msra.mxu0 %v192
    %234 = vmatprep.subr.bf16.mxu0 0
    %235 = vmatpush1.bf16.msra.mxu0 %v193
    %236 = vmatprep.subr.bf16.mxu0 0
    %237 = vmatpush1.bf16.msra.mxu0 %v194
    %238 = vmatprep.subr.bf16.mxu0 0
    %239 = vmatpush1.bf16.msra.mxu0 %v195
    %240 = vmatprep.subr.bf16.mxu0 0
    %241 = vmatpush1.bf16.msra.mxu0 %v196
    %242 = vmatprep.subr.bf16.mxu0 0
    %243 = vmatpush1.bf16.msra.mxu0 %v197
    %244 = vmatprep.subr.bf16.mxu0 0
    %245 = vmatpush1.bf16.msra.mxu0 %v198
    %246 = vmatprep.subr.bf16.mxu0 0
    %247 = vmatpush1.bf16.msra.mxu0 %v199
    %248 = vmatprep.mubr.bf16.mxu0 %v76
    %249 = vmatmul.mubr.bf16.gmra.mrb[0].mxu0 %v75
    %v250 = vpop.f32.mrb[0].mxu0
    %v251 = vadd.f32 %v118, %v250
    %v252 = vpop.f32.mrb[0].mxu0
    %v253 = vpop.f32.mrb[0].mxu0
    %v254 = vadd.f32 %v118, %v253
    %v255 = vpop.f32.mrb[0].mxu0
    %256 = vmatprep.mubr.bf16.mxu0 %v78
    %257 = vmatmul.mubr.bf16.gmra.mrb[0].mxu0 %v77
    %v258 = vpop.f32.mrb[0].mxu0
    %v259 = vadd.f32 %v118, %v258
    %v260 = vpop.f32.mrb[0].mxu0
    %v261 = vpop.f32.mrb[0].mxu0
    %v262 = vadd.f32 %v118, %v261
    %v263 = vpop.f32.mrb[0].mxu0
    %264 = vmatprep.mubr.bf16.mxu0 %v80
    %265 = vmatmul.mubr.bf16.gmra.mrb[0].mxu0 %v79
    %v266 = vpop.f32.mrb[0].mxu0
    %v267 = vadd.f32 %v118, %v266
    %v268 = vpop.f32.mrb[0].mxu0
    %v269 = vpop.f32.mrb[0].mxu0
    %v270 = vadd.f32 %v118, %v269
    %v271 = vpop.f32.mrb[0].mxu0
    %272 = vdwg.mxu0
    %v273 = vmax.f32 %v251, 0.0
    %v274 = vmax.f32 %v254, 0.0
    %v275 = vmax.f32 %v259, 0.0
    %v276 = vmax.f32 %v262, 0.0
    %v277 = vmax.f32 %v267, 0.0
    %v278 = vmax.f32 %v270, 0.0
    %v279 = vpack.c.bf16 %v274, %v273
    %v280 = vpack.c.bf16 %v276, %v275
    %v281 = vpack.c.bf16 %v278, %v277
    %v282 = vld [vmem:[#allocation7] sm:$0xff]
    %v283 = vld [vmem:[#allocation7 + $0x8] sm:$0xff]
    %v284 = vld [vmem:[#allocation7 + $0x10] sm:$0xff]
    %v285 = vld [vmem:[#allocation7 + $0x18] sm:$0xff]
    %v286 = vld [vmem:[#allocation7 + $0x20] sm:$0xff]
    %v287 = vld [vmem:[#allocation7 + $0x28] sm:$0xff]
    %v288 = vld [vmem:[#allocation7 + $0x30] sm:$0xff]
    %v289 = vld [vmem:[#allocation7 + $0x38] sm:$0xff]
    %v290 = vld [vmem:[#allocation7 + $0x40] sm:$0xff]
    %v291 = vld [vmem:[#allocation7 + $0x48] sm:$0xff]
    %v292 = vld [vmem:[#allocation7 + $0x50] sm:$0xff]
    %v293 = vld [vmem:[#allocation7 + $0x58] sm:$0xff]
    %v294 = vld [vmem:[#allocation7 + $0x60] sm:$0xff]
    %v295 = vld [vmem:[#allocation7 + $0x68] sm:$0xff]
    %v296 = vld [vmem:[#allocation7 + $0x70] sm:$0xff]
    %v297 = vld [vmem:[#allocation7 + $0x78] sm:$0xff]
    %v298 = vld [vmem:[%s4] sm:$0x3]
    %v300 = vlaneseq
    %v301 = vshrl.u32 %v300, 7
    %v302 = vsub.s32 0, %v301
    %v303 = vrot.slane %v298, %v302
    %v304 = vlaneseq
    %v305 = vshrl.u32 %v304, 7
    %v306 = vsub.s32 1, %v305
    %v307 = vrot.slane %v298, %v306
    %v326 = vunpack.c.l.b16 %v282
    %v327 = vunpack.c.h.b16 %v282
    %v328 = vunpack.c.l.b16 %v283
    %v329 = vunpack.c.h.b16 %v283
    %v330 = vunpack.c.l.b16 %v284
    %v331 = vunpack.c.h.b16 %v284
    %v332 = vunpack.c.l.b16 %v285
    %v333 = vunpack.c.h.b16 %v285
    %v334 = vunpack.c.l.b16 %v286
    %v335 = vunpack.c.h.b16 %v286
    %v336 = vunpack.c.l.b16 %v287
    %v337 = vunpack.c.h.b16 %v287
    %v338 = vunpack.c.l.b16 %v288
    %v339 = vunpack.c.h.b16 %v288
    %v340 = vunpack.c.l.b16 %v289
    %v341 = vunpack.c.h.b16 %v289
    %v342 = vunpack.c.l.b16 %v290
    %v343 = vunpack.c.h.b16 %v290
    %v344 = vunpack.c.l.b16 %v291
    %v345 = vunpack.c.h.b16 %v291
    %v346 = vunpack.c.l.b16 %v292
    %v347 = vunpack.c.h.b16 %v292
    %v348 = vunpack.c.l.b16 %v293
    %v349 = vunpack.c.h.b16 %v293
    %v350 = vunpack.c.l.b16 %v294
    %v351 = vunpack.c.h.b16 %v294
    %v352 = vunpack.c.l.b16 %v295
    %v353 = vunpack.c.h.b16 %v295
    %v354 = vunpack.c.l.b16 %v296
    %v355 = vunpack.c.h.b16 %v296
    %v356 = vunpack.c.l.b16 %v297
    %v357 = vunpack.c.h.b16 %v297
    %v358 = vpack.c.b16 %v328, %v326
    %v359 = vpack.c.b16 %v329, %v327
    %v360 = vpack.c.b16 %v332, %v330
    %v361 = vpack.c.b16 %v333, %v331
    %v362 = vpack.c.b16 %v336, %v334
    %v363 = vpack.c.b16 %v337, %v335
    %v364 = vpack.c.b16 %v340, %v338
    %v365 = vpack.c.b16 %v341, %v339
    %v366 = vpack.c.b16 %v344, %v342
    %v367 = vpack.c.b16 %v345, %v343
    %v368 = vpack.c.b16 %v348, %v346
    %v369 = vpack.c.b16 %v349, %v347
    %v370 = vpack.c.b16 %v352, %v350
    %v371 = vpack.c.b16 %v353, %v351
    %v372 = vpack.c.b16 %v356, %v354
    %v373 = vpack.c.b16 %v357, %v355
    %390 = vmatprep.subr.bf16.mxu0 %v359
    %391 = vmatpush1.bf16.msra.mxu0 %v358
    %392 = vmatprep.subr.bf16.mxu0 %v361
    %393 = vmatpush1.bf16.msra.mxu0 %v360
    %394 = vmatprep.subr.bf16.mxu0 %v363
    %395 = vmatpush1.bf16.msra.mxu0 %v362
    %396 = vmatprep.subr.bf16.mxu0 %v365
    %397 = vmatpush1.bf16.msra.mxu0 %v364
    %398 = vmatprep.subr.bf16.mxu0 %v367
    %399 = vmatpush1.bf16.msra.mxu0 %v366
    %400 = vmatprep.subr.bf16.mxu0 %v369
    %401 = vmatpush1.bf16.msra.mxu0 %v368
    %402 = vmatprep.subr.bf16.mxu0 %v371
    %403 = vmatpush1.bf16.msra.mxu0 %v370
    %404 = vmatprep.subr.bf16.mxu0 %v373
    %405 = vmatpush1.bf16.msra.mxu0 %v372
    %406 = vmatprep.subr.bf16.mxu0 0
    %407 = vmatpush1.bf16.msra.mxu0 0
    %408 = vmatprep.subr.bf16.mxu0 0
    %409 = vmatpush1.bf16.msra.mxu0 0
    %410 = vmatprep.subr.bf16.mxu0 0
    %411 = vmatpush1.bf16.msra.mxu0 0
    %412 = vmatprep.subr.bf16.mxu0 0
    %413 = vmatpush1.bf16.msra.mxu0 0
    %414 = vmatprep.subr.bf16.mxu0 0
    %415 = vmatpush1.bf16.msra.mxu0 0
    %416 = vmatprep.subr.bf16.mxu0 0
    %417 = vmatpush1.bf16.msra.mxu0 0
    %418 = vmatprep.subr.bf16.mxu0 0
    %419 = vmatpush1.bf16.msra.mxu0 0
    %420 = vmatprep.subr.bf16.mxu0 0
    %421 = vmatpush1.bf16.msra.mxu0 0
    %422 = vmatprep.mubr.bf16.mxu0 0
    %423 = vmatmul.mubr.bf16.gmra.mrb[0].mxu0 %v279
    %v424 = vpop.f32.mrb[0].mxu0
    %v425 = vadd.f32 %v303, %v424
    %v426 = vpop.f32.mrb[0].mxu0
    %v427 = vadd.f32 %v307, %v426
    %v428 = vpop.f32.mrb[0].mxu0
    %v429 = vadd.f32 %v303, %v428
    %v430 = vpop.f32.mrb[0].mxu0
    %v431 = vadd.f32 %v307, %v430
    %432 = vmatprep.mubr.bf16.mxu0 0
    %433 = vmatmul.mubr.bf16.gmra.mrb[0].mxu0 %v280
    %v434 = vpop.f32.mrb[0].mxu0
    %v435 = vadd.f32 %v303, %v434
    %v436 = vpop.f32.mrb[0].mxu0
    %v437 = vadd.f32 %v307, %v436
    %v438 = vpop.f32.mrb[0].mxu0
    %v439 = vadd.f32 %v303, %v438
    %v440 = vpop.f32.mrb[0].mxu0
    %v441 = vadd.f32 %v307, %v440
    %442 = vmatprep.mubr.bf16.mxu0 0
    %443 = vmatmul.mubr.bf16.gmra.mrb[0].mxu0 %v281
    %v444 = vpop.f32.mrb[0].mxu0
    %v445 = vadd.f32 %v303, %v444
    %v446 = vpop.f32.mrb[0].mxu0
    %v447 = vadd.f32 %v307, %v446
    %v448 = vpop.f32.mrb[0].mxu0
    %v449 = vadd.f32 %v303, %v448
    %v450 = vpop.f32.mrb[0].mxu0
    %v451 = vadd.f32 %v307, %v450
    %452 = vdwg.mxu0
    %453 = vst [vmem:[#allocation8] sm:$0xff] %v425
    %454 = vst [vmem:[#allocation8 + $0x8] sm:$0xff] %v427
    %455 = vst [vmem:[#allocation8 + $0x10] sm:$0xff] %v429
    %456 = vst [vmem:[#allocation8 + $0x18] sm:$0xff] %v431
    %457 = vst [vmem:[#allocation8 + $0x20] sm:$0xff] %v435
    %458 = vst [vmem:[#allocation8 + $0x28] sm:$0xff] %v437
    %459 = vst [vmem:[#allocation8 + $0x30] sm:$0xff] %v439
    %460 = vst [vmem:[#allocation8 + $0x38] sm:$0xff] %v441
    %461 = vst [vmem:[#allocation8 + $0x40] sm:$0xff] %v445
    %462 = vst [vmem:[#allocation8 + $0x48] sm:$0xff] %v447
    %463 = vst [vmem:[#allocation8 + $0x50] sm:$0xff] %v449
    %464 = vst [vmem:[#allocation8 + $0x58] sm:$0xff] %v451
    // Predicated region
    $region34: #{tpu_custom_call.1} parent=1 // pred_check
      _
    $region35: #{tpu_custom_call.1} parent=1 // pred_check_branch
      %466 = sbr.rel (0) target = $region37
    $region36: #{tpu_custom_call.1} parent=1 // pred_region
      %s468 = ssub.s32 1536, 1536
      %469 = vsyncadd [#allocation4], %s468
      %s470 = sshll.u32 [#allocation8], 4
      %s471 = int_to_ptr.vmem [resolvable:$true] %s470
      %476 = dma.vmem_to_hbm [thread:$0]  %s471, 1536, %s5, [#allocation4], 256, 256, 16
    $region37: #{tpu_custom_call.1} parent=1 // pred_fallthru
      _
    // Predicated region
    $region38: #{tpu_custom_call.1} parent=1 // pred_check
      _
    $region39: #{tpu_custom_call.1} parent=1 // pred_check_branch
      %478 = sbr.rel (0) target = $region41
    $region40: #{tpu_custom_call.1} parent=1 // pred_region
      %479 = dma.done [#allocation4], 1536
    $region41: #{tpu_custom_call.1} parent=1 // pred_fallthru
      _
    %480 = vsyncpa [#allocation3], 1
    %481 = vsyncpa [#allocation6], 1
    %482 = vsyncpa [#allocation4], 1

</llo_original>
